<compile_context>
chip_gen: v5e
topology: v5e:2x2
jax: 0.10.0
libtpu: 0.0.40
codegen_flags: <defaults>
</compile_context>

<pallas_src>
import jax
import jax.numpy as jnp
from jax.experimental import pallas as pl
from jax.experimental.pallas import tpu as pltpu


def convnet_kernel(x0_ref, x1_ref, x2_ref, w1_ref, b1_ref, w2_ref, b2_ref,
                   out_ref):
    """Fused Conv1d(1->C,k=2,pad=1)+ReLU -> Conv1d(C->1,k=2)+ReLU for one tile.

    x0_ref/x1_ref/x2_ref : (Nb, T)  pre-shifted padded input taps xp[t+k], k=0,1,2
                                    (time on the lane axis)
    w1_ref : (C, 2)  layer1 weights  [channel, kernel_tap]
    b1_ref : (C, 1)  layer1 bias
    w2_ref : (C, 2)  layer2 weights  [channel, kernel_tap]
    b2_ref : (1, 1)  layer2 bias (SMEM scalar)
    out_ref: (Nb, T) output tile (channel dim re-added in the wrapper)
    """
    x0 = x0_ref[...]                          # (Nb, T)   xp[t]
    x1 = x1_ref[...]                          # (Nb, T)   xp[t+1]
    x2 = x2_ref[...]                          # (Nb, T)   xp[t+2]
    _, t = x0.shape

    w1_0 = w1_ref[:, 0:1][None, :, :]         # (1, C, 1)
    w1_1 = w1_ref[:, 1:2][None, :, :]
    b1 = b1_ref[...][None, :, :]              # (1, C, 1)
    w2_0 = w2_ref[:, 0:1][None, :, :]
    w2_1 = w2_ref[:, 1:2][None, :, :]
    b2 = b2_ref[0, 0]                         # scalar (SMEM)

    # ---- layer1 (shared): relu(y1)[n, c, t], channels on sublanes ----------
    y1 = jnp.maximum(x0[:, None, :] * w1_0 + x1[:, None, :] * w1_1 + b1, 0)
    # (Nb, C, T)

    # ---- layer2: per-tap channel contractions (sublane reduce, f32 acc) ----
    q0 = jnp.sum(y1 * w2_0, axis=1, dtype=jnp.float32)     # (Nb, T): tap0 @ t
    q1 = jnp.sum(y1 * w2_1, axis=1, dtype=jnp.float32)     # (Nb, T): tap1 @ t

    # out[t] needs tap1 @ (t+1). For the tile's last column, t+1 lives in the
    # next tile, so recompute just that one column from the halo taps x1/x2.
    x1_last = x1[:, t - 1:t]                                # xp[tile_end]
    x2_last = x2[:, t - 1:t]                                # xp[tile_end + 1]
    y1_next = jnp.maximum(
        x1_last[:, None, :] * w1_0 + x2_last[:, None, :] * w1_1 + b1, 0)
    q1_last = jnp.sum(y1_next * w2_1, axis=1, dtype=jnp.float32)   # (Nb, 1)

    q1_shift = jnp.concatenate([q1[:, 1:], q1_last], axis=1)       # tap1 @ t+1

    out_ref[...] = jnp.maximum(q0 + q1_shift + b2, 0.0).astype(out_ref.dtype)


def _round_up(x, m):
    return (x + m - 1) // m * m


def convnet_forward(x, w1, b1, w2, b2, *, block_n=8, block_t=2048,
                    compute_dtype=jnp.float32):
    """x: (N, 1, L) float32 (PyTorch NCL).  Returns (N, 1, L) float32.

    compute_dtype: keep jnp.float32 on v5e; jnp.bfloat16 is recommended on
    v6e/v7x (channel sums still accumulate in float32 inside the kernel).
    """
    n, c_in, l = x.shape
    assert c_in == 1
    c = w1.shape[0]                       # 60 conv channels

    # ---- tile-size selection: time tile lane-dense (multiple of 128) -------
    block_t = max(128, _round_up(block_t, 128))
    blk_t = min(block_t, _round_up(l, 128))
    ltot = _round_up(l, blk_t)
    if n <= block_n:
        blk_n = n                         # single batch block (= full dim)
    else:
        blk_n = _round_up(block_n, 8)     # tiled batch blocks: multiple of 8
    npad = _round_up(n, blk_n)

    # ---- wrapper glue: padded input + three lane-aligned shifted views -----
    # xpad[:, j] = conv zero padding / x[:, j-1] / zero tail, width ltot + 2.
    xpad = jnp.zeros((npad, ltot + 2), jnp.float32)
    xpad = xpad.at[:n, 1:l + 1].set(x[:, 0, :])
    x0 = xpad[:, 0:ltot].astype(compute_dtype)        # xp[t]
    x1 = xpad[:, 1:ltot + 1].astype(compute_dtype)    # xp[t+1]
    x2 = xpad[:, 2:ltot + 2].astype(compute_dtype)    # xp[t+2]

    w1s = w1[:, 0, :].astype(compute_dtype)            # (C, 2)
    b1s = b1.reshape(c, 1).astype(compute_dtype)       # (C, 1)
    w2s = w2[0, :, :].astype(compute_dtype)            # (C, 2)
    b2s = b2.reshape(1, 1).astype(jnp.float32)         # (1, 1) scalar -> SMEM

    grid = (npad // blk_n, ltot // blk_t)
    x_spec = pl.BlockSpec((blk_n, blk_t), lambda i, j: (i, j))
    const = lambda i, j: (0, 0)           # weights resident across grid steps

    out = pl.pallas_call(
        convnet_kernel,
        out_shape=jax.ShapeDtypeStruct((npad, ltot), jnp.float32),
        grid=grid,
        in_specs=[
            x_spec, x_spec, x_spec,
            pl.BlockSpec((c, 2), const),
            pl.BlockSpec((c, 1), const),
            pl.BlockSpec((c, 2), const),
            pl.BlockSpec(memory_space=pltpu.MemorySpace.SMEM),
        ],
        out_specs=pl.BlockSpec((blk_n, blk_t), lambda i, j: (i, j)),
        compiler_params=pltpu.CompilerParams(
            dimension_semantics=("parallel", "parallel"),
            vmem_limit_bytes=32 * 1024 * 1024,
        ),
    )(x0, x1, x2, w1s, b1s, w2s, b2s)

    return out[:n, :l].reshape(n, 1, l)


def reference_forward(x, w1, b1, w2, b2):
    """Pure-JAX reference mirroring the PyTorch module (lax conv, f32)."""
    dn1 = jax.lax.conv_dimension_numbers(x.shape, w1.shape, ('NCH', 'OIH', 'NCH'))
    y1 = jax.lax.conv_general_dilated(x, w1, window_strides=(1,),
                                      padding=[(1, 1)], dimension_numbers=dn1,
                                      precision=jax.lax.Precision.HIGHEST)
    y1 = jnp.maximum(y1 + b1[None, :, None], 0.0)
    dn2 = jax.lax.conv_dimension_numbers(y1.shape, w2.shape, ('NCH', 'OIH', 'NCH'))
    y2 = jax.lax.conv_general_dilated(y1, w2, window_strides=(1,),
                                      padding=[(0, 0)], dimension_numbers=dn2,
                                      precision=jax.lax.Precision.HIGHEST)
    return jnp.maximum(y2 + b2[None, :, None], 0.0)


if __name__ == "__main__":
    key = jax.random.PRNGKey(0)
    k_x, k_w1, k_b1, k_w2, k_b2, k_x2 = jax.random.split(key, 6)

    # Deterministic parameters (shapes match nn.Conv1d in the module).
    w1 = jax.random.normal(k_w1, (60, 1, 2), dtype=jnp.float32) * 0.5
    b1 = jax.random.normal(k_b1, (60,), dtype=jnp.float32) * 0.1
    w2 = jax.random.normal(k_w2, (1, 60, 2), dtype=jnp.float32) * 0.5
    b2 = jax.random.normal(k_b2, (1,), dtype=jnp.float32) * 0.1

    # Small canonical test (module-consistent shapes).
    N, L = 2, 16
    x = jax.random.normal(k_x, (N, 1, L), dtype=jnp.float32)
    out = jax.block_until_ready(convnet_forward(x, w1, b1, w2, b2))
    ref = reference_forward(x, w1, b1, w2, b2)
    assert out.shape == (N, 1, L)
    assert jnp.allclose(out, ref, rtol=1e-5, atol=1e-5)

    # Tiled-path test: exercises batch tiling/padding, multiple time tiles and
    # the cross-tile halo column (small blocks chosen on purpose).
    N2, L2 = 20, 1000
    x_big = jax.random.normal(k_x2, (N2, 1, L2), dtype=jnp.float32)
    out_big = jax.block_until_ready(
        convnet_forward(x_big, w1, b1, w2, b2, block_n=8, block_t=256))
    ref_big = reference_forward(x_big, w1, b1, w2, b2)
    assert out_big.shape == (N2, 1, L2)
    assert jnp.allclose(out_big, ref_big, rtol=1e-4, atol=1e-4)

    print("KERNEL_OK")
</pallas_src>

<mosaic_0001>
module attributes {stable_mosaic.version = 11 : i64} {
  func.func @convnet_kernel(%arg0: i32, %arg1: i32, %arg2: memref<2x128xf32, #tpu.memory_space<vmem>>, %arg3: memref<2x128xf32, #tpu.memory_space<vmem>>, %arg4: memref<2x128xf32, #tpu.memory_space<vmem>>, %arg5: memref<60x2xf32, #tpu.memory_space<vmem>>, %arg6: memref<60x1xf32, #tpu.memory_space<vmem>>, %arg7: memref<60x2xf32, #tpu.memory_space<vmem>>, %arg8: memref<1x1xf32, #tpu.memory_space<smem>>, %arg9: memref<2x128xf32, #tpu.memory_space<vmem>>) attributes {dimension_semantics = [#tpu.dimension_semantics<parallel>, #tpu.dimension_semantics<parallel>], iteration_bounds = array<i64: 1, 1>, scalar_prefetch = 0 : i64, scratch_operands = 0 : i64, tpu.core_type = #tpu.core_type<tc>, window_params = [{transform_indices = @transform_0, window_bounds = array<i64: 2, 128>}, {transform_indices = @transform_1, window_bounds = array<i64: 2, 128>}, {transform_indices = @transform_2, window_bounds = array<i64: 2, 128>}, {pipeline_mode = #tpu.pipeline_mode<synchronous>, transform_indices = @transform_3, window_bounds = array<i64: 60, 2>}, {pipeline_mode = #tpu.pipeline_mode<synchronous>, transform_indices = @transform_4, window_bounds = array<i64: 60, 1>}, {pipeline_mode = #tpu.pipeline_mode<synchronous>, transform_indices = @transform_5, window_bounds = array<i64: 60, 2>}, {transform_indices = @transform_6, window_bounds = array<i64: 1, 1>}, {transform_indices = @transform_7, window_bounds = array<i64: 2, 128>}]} {
    %c0 = arith.constant 0 : index
    %c0_0 = arith.constant 0 : index
    %0 = vector.load %arg2[%c0, %c0_0] : memref<2x128xf32, #tpu.memory_space<vmem>>, vector<2x128xf32>
    %c0_1 = arith.constant 0 : index
    %c0_2 = arith.constant 0 : index
    %1 = vector.load %arg3[%c0_1, %c0_2] : memref<2x128xf32, #tpu.memory_space<vmem>>, vector<2x128xf32>
    %c0_3 = arith.constant 0 : index
    %c0_4 = arith.constant 0 : index
    %2 = vector.load %arg4[%c0_3, %c0_4] : memref<2x128xf32, #tpu.memory_space<vmem>>, vector<2x128xf32>
    %c0_5 = arith.constant 0 : index
    %c0_6 = arith.constant 0 : index
    %3 = vector.load %arg5[%c0_5, %c0_6] : memref<60x2xf32, #tpu.memory_space<vmem>>, vector<60x1xf32>
    %4 = vector.shape_cast %3 : vector<60x1xf32> to vector<1x60x1xf32>
    %c0_7 = arith.constant 0 : index
    %c1 = arith.constant 1 : index
    %5 = vector.load %arg5[%c0_7, %c1] : memref<60x2xf32, #tpu.memory_space<vmem>>, vector<60x1xf32>
    %6 = vector.shape_cast %5 : vector<60x1xf32> to vector<1x60x1xf32>
    %c0_8 = arith.constant 0 : index
    %c0_9 = arith.constant 0 : index
    %7 = vector.load %arg6[%c0_8, %c0_9] : memref<60x1xf32, #tpu.memory_space<vmem>>, vector<60x1xf32>
    %8 = vector.shape_cast %7 : vector<60x1xf32> to vector<1x60x1xf32>
    %c0_10 = arith.constant 0 : index
    %c0_11 = arith.constant 0 : index
    %9 = vector.load %arg7[%c0_10, %c0_11] : memref<60x2xf32, #tpu.memory_space<vmem>>, vector<60x1xf32>
    %10 = vector.shape_cast %9 : vector<60x1xf32> to vector<1x60x1xf32>
    %c0_12 = arith.constant 0 : index
    %c1_13 = arith.constant 1 : index
    %11 = vector.load %arg7[%c0_12, %c1_13] : memref<60x2xf32, #tpu.memory_space<vmem>>, vector<60x1xf32>
    %12 = vector.shape_cast %11 : vector<60x1xf32> to vector<1x60x1xf32>
    %c0_14 = arith.constant 0 : index
    %c0_15 = arith.constant 0 : index
    %13 = memref.load %arg8[%c0_14, %c0_15] : memref<1x1xf32, #tpu.memory_space<smem>>
    %14 = vector.shape_cast %0 : vector<2x128xf32> to vector<2x1x128xf32>
    %15 = vector.broadcast %14 : vector<2x1x128xf32> to vector<2x60x128xf32>
    %16 = vector.broadcast %4 : vector<1x60x1xf32> to vector<2x60x128xf32>
    %17 = arith.mulf %15, %16 : vector<2x60x128xf32>
    %18 = vector.shape_cast %1 : vector<2x128xf32> to vector<2x1x128xf32>
    %19 = vector.broadcast %18 : vector<2x1x128xf32> to vector<2x60x128xf32>
    %20 = vector.broadcast %6 : vector<1x60x1xf32> to vector<2x60x128xf32>
    %21 = arith.mulf %19, %20 : vector<2x60x128xf32>
    %22 = arith.addf %17, %21 : vector<2x60x128xf32>
    %23 = vector.broadcast %8 : vector<1x60x1xf32> to vector<2x60x128xf32>
    %24 = arith.addf %22, %23 : vector<2x60x128xf32>
    %cst = arith.constant 0.000000e+00 : f32
    %25 = vector.broadcast %cst : f32 to vector<2x60x128xf32>
    %26 = arith.maximumf %24, %25 : vector<2x60x128xf32>
    %27 = vector.broadcast %10 : vector<1x60x1xf32> to vector<2x60x128xf32>
    %28 = arith.mulf %26, %27 : vector<2x60x128xf32>
    %cst_16 = arith.constant dense<0.000000e+00> : vector<2x128xf32>
    %29 = vector.multi_reduction <add>, %28, %cst_16 [1] : vector<2x60x128xf32> to vector<2x128xf32>
    %30 = vector.broadcast %12 : vector<1x60x1xf32> to vector<2x60x128xf32>
    %31 = arith.mulf %26, %30 : vector<2x60x128xf32>
    %cst_17 = arith.constant dense<0.000000e+00> : vector<2x128xf32>
    %32 = vector.multi_reduction <add>, %31, %cst_17 [1] : vector<2x60x128xf32> to vector<2x128xf32>
    %33 = vector.extract_strided_slice %1 {offsets = [0, 127], sizes = [2, 1], strides = [1, 1]} : vector<2x128xf32> to vector<2x1xf32>
    %34 = vector.extract_strided_slice %2 {offsets = [0, 127], sizes = [2, 1], strides = [1, 1]} : vector<2x128xf32> to vector<2x1xf32>
    %35 = vector.shape_cast %33 : vector<2x1xf32> to vector<2x1x1xf32>
    %36 = vector.broadcast %35 : vector<2x1x1xf32> to vector<2x60x1xf32>
    %37 = vector.broadcast %4 : vector<1x60x1xf32> to vector<2x60x1xf32>
    %38 = arith.mulf %36, %37 : vector<2x60x1xf32>
    %39 = vector.shape_cast %34 : vector<2x1xf32> to vector<2x1x1xf32>
    %40 = vector.broadcast %39 : vector<2x1x1xf32> to vector<2x60x1xf32>
    %41 = vector.broadcast %6 : vector<1x60x1xf32> to vector<2x60x1xf32>
    %42 = arith.mulf %40, %41 : vector<2x60x1xf32>
    %43 = arith.addf %38, %42 : vector<2x60x1xf32>
    %44 = vector.broadcast %8 : vector<1x60x1xf32> to vector<2x60x1xf32>
    %45 = arith.addf %43, %44 : vector<2x60x1xf32>
    %cst_18 = arith.constant 0.000000e+00 : f32
    %46 = vector.broadcast %cst_18 : f32 to vector<2x60x1xf32>
    %47 = arith.maximumf %45, %46 : vector<2x60x1xf32>
    %48 = vector.broadcast %12 : vector<1x60x1xf32> to vector<2x60x1xf32>
    %49 = arith.mulf %47, %48 : vector<2x60x1xf32>
    %cst_19 = arith.constant dense<0.000000e+00> : vector<2x1xf32>
    %50 = vector.multi_reduction <add>, %49, %cst_19 [1] : vector<2x60x1xf32> to vector<2x1xf32>
    %51 = vector.extract_strided_slice %32 {offsets = [0, 1], sizes = [2, 127], strides = [1, 1]} : vector<2x128xf32> to vector<2x127xf32>
    %52 = tpu.concatenate %51, %50 in 1 : vector<2x127xf32>, vector<2x1xf32> -> vector<2x128xf32>
    %53 = arith.addf %29, %52 : vector<2x128xf32>
    %54 = vector.broadcast %13 : f32 to vector<2x128xf32>
    %55 = arith.addf %53, %54 : vector<2x128xf32>
    %cst_20 = arith.constant 0.000000e+00 : f32
    %56 = vector.broadcast %cst_20 : f32 to vector<2x128xf32>
    %57 = arith.maximumf %55, %56 : vector<2x128xf32>
    %c0_21 = arith.constant 0 : index
    %c0_22 = arith.constant 0 : index
    %58 = vector.load %arg9[%c0_21, %c0_22] : memref<2x128xf32, #tpu.memory_space<vmem>>, vector<2x128xf32>
    tpu.vector_store %arg9[%c0_21, %c0_22], %57 {strides = array<i32>} : memref<2x128xf32, #tpu.memory_space<vmem>>, vector<2x128xf32>,
    return
  }
  func.func @transform_0(%arg0: i32, %arg1: i32) -> (i32, i32) {
    %c0_i32 = arith.constant 0 : i32
    return %arg0, %arg1 : i32, i32
  }
  func.func @transform_1(%arg0: i32, %arg1: i32) -> (i32, i32) {
    %c0_i32 = arith.constant 0 : i32
    return %arg0, %arg1 : i32, i32
  }
  func.func @transform_2(%arg0: i32, %arg1: i32) -> (i32, i32) {
    %c0_i32 = arith.constant 0 : i32
    return %arg0, %arg1 : i32, i32
  }
  func.func @transform_3(%arg0: i32, %arg1: i32) -> (i32, i32) {
    %c0_i32 = arith.constant 0 : i32
    %c0_i32_0 = arith.constant 0 : i32
    %c0_i32_1 = arith.constant 0 : i32
    return %c0_i32, %c0_i32_0 : i32, i32
  }
  func.func @transform_4(%arg0: i32, %arg1: i32) -> (i32, i32) {
    %c0_i32 = arith.constant 0 : i32
    %c0_i32_0 = arith.constant 0 : i32
    %c0_i32_1 = arith.constant 0 : i32
    return %c0_i32, %c0_i32_0 : i32, i32
  }
  func.func @transform_5(%arg0: i32, %arg1: i32) -> (i32, i32) {
    %c0_i32 = arith.constant 0 : i32
    %c0_i32_0 = arith.constant 0 : i32
    %c0_i32_1 = arith.constant 0 : i32
    return %c0_i32, %c0_i32_0 : i32, i32
  }
  func.func @transform_6(%arg0: i32, %arg1: i32) -> (i32, i32) {
    %c0_i32 = arith.constant 0 : i32
    %c0_i32_0 = arith.constant 0 : i32
    %c0_i32_1 = arith.constant 0 : i32
    return %c0_i32, %c0_i32_0 : i32, i32
  }
  func.func @transform_7(%arg0: i32, %arg1: i32) -> (i32, i32) {
    %c0_i32 = arith.constant 0 : i32
    return %arg0, %arg1 : i32, i32
  }
}

</mosaic_0001>

<llo_original>
// kernel: tpu_custom_call.1
$region0: #{tpu_custom_call.1}
  #allocation0 [shape = 'u32[]', space=smem, size = 0x4, offset = 0x4, fixed_abs, tag = 'smem constant byte address 0x4 - core index']
  #allocation1 [shape = 'u32[72,128]{1,0:T(1,128)}', space=vmem, size = 0x9000, scoped, tag = 'internal scratch']
  #allocation2 [shape = 'f32[1,1]{1,0:T(1,128)S(6)}', space=smem, size = 0x200, scoped, tag = 'scoped memory for tpu_custom_call.1']
  %s0 = inlined_call_operand.vmem [shape: f32[2,128], index: 0, kind: input, shape index: {}]
  %s1 = inlined_call_operand.vmem [shape: f32[2,128], index: 1, kind: input, shape index: {}]
  %s2 = inlined_call_operand.vmem [shape: f32[2,128], index: 2, kind: input, shape index: {}]
  %s3 = inlined_call_operand.vmem [shape: f32[60,2], index: 3, kind: input, shape index: {}]
  %s4 = inlined_call_operand.vmem [shape: f32[60,1], index: 4, kind: input, shape index: {}]
  %s5 = inlined_call_operand.vmem [shape: f32[60,2], index: 5, kind: input, shape index: {}]
  %s6 = inlined_call_operand.<no memory space> [shape: f32[1,1], index: 6, kind: input, shape index: {}]
  %s7 = inlined_call_operand.hbm [shape: f32[2,128], index: 7, kind: output, shape index: {}]
  %s8 = sld [smem:[#allocation0]]
  $region38: #{tpu_custom_call.1} parent=0
    _
  %s10 = ssub.s32 1, %s8
  %s11 = scalar_select 0, %s10, %s8
  %12 = sst [smem:[#allocation2]] %s6
  $region1: #{tpu_custom_call.1} parent=0
    #allocation3 [shape = 'u8[1024]{0}', space=vmem, size = 0x400, scoped, tag = 'output window, operand 0, single buffered']
    #allocation4 [shape = 's32[1]{0}', space=sflag, size = 0x4, scoped, tag = 'scoped memory for tpu_custom_call.1']
    %13 = vsyncpa [#allocation4], 0
    // Predicated region
    $region2: #{tpu_custom_call.1} parent=1 // pred_check
      _
    $region3: #{tpu_custom_call.1} parent=1 // pred_check_branch
      %15 = sbr.rel (0) target = $region5
    $region4: #{tpu_custom_call.1} parent=1 // pred_region
      _
    $region5: #{tpu_custom_call.1} parent=1 // pred_fallthru
      _
    // Predicated region
    $region6: #{tpu_custom_call.1} parent=1 // pred_check
      _
    $region7: #{tpu_custom_call.1} parent=1 // pred_check_branch
      %17 = sbr.rel (0) target = $region9
    $region8: #{tpu_custom_call.1} parent=1 // pred_region
      _
    $region9: #{tpu_custom_call.1} parent=1 // pred_fallthru
      _
    // Predicated region
    $region10: #{tpu_custom_call.1} parent=1 // pred_check
      _
    $region11: #{tpu_custom_call.1} parent=1 // pred_check_branch
      %19 = sbr.rel (0) target = $region13
    $region12: #{tpu_custom_call.1} parent=1 // pred_region
      _
    $region13: #{tpu_custom_call.1} parent=1 // pred_fallthru
      _
    // Predicated region
    $region14: #{tpu_custom_call.1} parent=1 // pred_check
      _
    $region15: #{tpu_custom_call.1} parent=1 // pred_check_branch
      %21 = sbr.rel (0) target = $region17
    $region16: #{tpu_custom_call.1} parent=1 // pred_region
      _
    $region17: #{tpu_custom_call.1} parent=1 // pred_fallthru
      _
    // Predicated region
    $region18: #{tpu_custom_call.1} parent=1 // pred_check
      _
    $region19: #{tpu_custom_call.1} parent=1 // pred_check_branch
      %23 = sbr.rel (0) target = $region21
    $region20: #{tpu_custom_call.1} parent=1 // pred_region
      _
    $region21: #{tpu_custom_call.1} parent=1 // pred_fallthru
      _
    // Predicated region
    $region22: #{tpu_custom_call.1} parent=1 // pred_check
      _
    $region23: #{tpu_custom_call.1} parent=1 // pred_check_branch
      %25 = sbr.rel (0) target = $region25
    $region24: #{tpu_custom_call.1} parent=1 // pred_region
      _
    $region25: #{tpu_custom_call.1} parent=1 // pred_fallthru
      _
    // Predicated region
    $region26: #{tpu_custom_call.1} parent=1 // pred_check
      _
    $region27: #{tpu_custom_call.1} parent=1 // pred_check_branch
      %27 = sbr.rel (0) target = $region29
    $region28: #{tpu_custom_call.1} parent=1 // pred_region
      _
    $region29: #{tpu_custom_call.1} parent=1 // pred_fallthru
      _
    %v28 = vld [vmem:[%s0] sm:$0x3]
    %v29 = vld [vmem:[%s1] sm:$0x3]
    %v30 = vld [vmem:[%s2] sm:$0x3]
    %v31 = vld [vmem:[%s3] sm:$0xff]
    %v32 = vld [vmem:[%s3 + $0x8] sm:$0xff]
    %v33 = vld [vmem:[%s3 + $0x10] sm:$0xff]
    %v34 = vld [vmem:[%s3 + $0x18] sm:$0xff]
    %v35 = vld [vmem:[%s3 + $0x20] sm:$0xff]
    %v36 = vld [vmem:[%s3 + $0x28] sm:$0xff]
    %v37 = vld [vmem:[%s3 + $0x30] sm:$0xff]
    %v38 = vld [vmem:[%s3 + $0x38] sm:$0xf]
    %v39 = vld [vmem:[%s4] sm:$0xff]
    %v40 = vld [vmem:[%s4 + $0x8] sm:$0xff]
    %v41 = vld [vmem:[%s4 + $0x10] sm:$0xff]
    %v42 = vld [vmem:[%s4 + $0x18] sm:$0xff]
    %v43 = vld [vmem:[%s4 + $0x20] sm:$0xff]
    %v44 = vld [vmem:[%s4 + $0x28] sm:$0xff]
    %v45 = vld [vmem:[%s4 + $0x30] sm:$0xff]
    %v46 = vld [vmem:[%s4 + $0x38] sm:$0xf]
    %v47 = vld [vmem:[%s5] sm:$0xff]
    %v48 = vld [vmem:[%s5 + $0x8] sm:$0xff]
    %v49 = vld [vmem:[%s5 + $0x10] sm:$0xff]
    %v50 = vld [vmem:[%s5 + $0x18] sm:$0xff]
    %v51 = vld [vmem:[%s5 + $0x20] sm:$0xff]
    %v52 = vld [vmem:[%s5 + $0x28] sm:$0xff]
    %v53 = vld [vmem:[%s5 + $0x30] sm:$0xff]
    %v54 = vld [vmem:[%s5 + $0x38] sm:$0xf]
    %s55 = sld [smem:[#allocation2]]
    %v57 = vrot.slane %v28, 1
    %v58 = vperm.slane %v28, 0
    %v59 = vperm.slane %v57, 0
    %63 = vset.pattern.permute.xlu0 0
    %64 = vperm.xlu0 %63, %v31
    %v65 = vpop.permute.xlu0 %64
    %68 = vset.pattern.permute.xlu0 0
    %69 = vperm.xlu0 %68, %v32
    %v70 = vpop.permute.xlu0 %69
    %73 = vset.pattern.permute.xlu0 0
    %74 = vperm.xlu0 %73, %v33
    %v75 = vpop.permute.xlu0 %74
    %78 = vset.pattern.permute.xlu0 0
    %79 = vperm.xlu0 %78, %v34
    %v80 = vpop.permute.xlu0 %79
    %83 = vset.pattern.permute.xlu0 0
    %84 = vperm.xlu0 %83, %v35
    %v85 = vpop.permute.xlu0 %84
    %88 = vset.pattern.permute.xlu0 0
    %89 = vperm.xlu0 %88, %v36
    %v90 = vpop.permute.xlu0 %89
    %93 = vset.pattern.permute.xlu0 0
    %94 = vperm.xlu0 %93, %v37
    %v95 = vpop.permute.xlu0 %94
    %98 = vset.pattern.permute.xlu0 0
    %99 = vperm.xlu0 %98, %v38
    %v100 = vpop.permute.xlu0 %99
    %v102 = vmul.f32 %v58, %v65
    %v103 = vmul.f32 %v58, %v70
    %v104 = vmul.f32 %v58, %v75
    %v105 = vmul.f32 %v58, %v80
    %v106 = vmul.f32 %v58, %v85
    %v107 = vmul.f32 %v58, %v90
    %v108 = vmul.f32 %v58, %v95
    %v109 = vmul.f32 %v58, %v100
    %v110 = vmul.f32 %v59, %v65
    %v111 = vmul.f32 %v59, %v70
    %v112 = vmul.f32 %v59, %v75
    %v113 = vmul.f32 %v59, %v80
    %v114 = vmul.f32 %v59, %v85
    %v115 = vmul.f32 %v59, %v90
    %v116 = vmul.f32 %v59, %v95
    %v117 = vmul.f32 %v59, %v100
    %v119 = vrot.slane %v29, 1
    %v120 = vperm.slane %v29, 0
    %v121 = vperm.slane %v119, 0
    %124 = vset.pattern.permute.xlu0 1
    %125 = vperm.xlu0 %124, %v31
    %v126 = vpop.permute.xlu0 %125
    %128 = vset.pattern.permute.xlu0 1
    %129 = vperm.xlu0 %128, %v32
    %v130 = vpop.permute.xlu0 %129
    %132 = vset.pattern.permute.xlu0 1
    %133 = vperm.xlu0 %132, %v33
    %v134 = vpop.permute.xlu0 %133
    %136 = vset.pattern.permute.xlu0 1
    %137 = vperm.xlu0 %136, %v34
    %v138 = vpop.permute.xlu0 %137
    %140 = vset.pattern.permute.xlu0 1
    %141 = vperm.xlu0 %140, %v35
    %v142 = vpop.permute.xlu0 %141
    %144 = vset.pattern.permute.xlu0 1
    %145 = vperm.xlu0 %144, %v36
    %v146 = vpop.permute.xlu0 %145
    %148 = vset.pattern.permute.xlu0 1
    %149 = vperm.xlu0 %148, %v37
    %v150 = vpop.permute.xlu0 %149
    %152 = vset.pattern.permute.xlu0 1
    %153 = vperm.xlu0 %152, %v38
    %v154 = vpop.permute.xlu0 %153
    %v156 = vmul.f32 %v120, %v126
    %v157 = vmul.f32 %v120, %v130
    %v158 = vmul.f32 %v120, %v134
    %v159 = vmul.f32 %v120, %v138
    %v160 = vmul.f32 %v120, %v142
    %v161 = vmul.f32 %v120, %v146
    %v162 = vmul.f32 %v120, %v150
    %v163 = vmul.f32 %v120, %v154
    %v164 = vmul.f32 %v121, %v126
    %v165 = vmul.f32 %v121, %v130
    %v166 = vmul.f32 %v121, %v134
    %v167 = vmul.f32 %v121, %v138
    %v168 = vmul.f32 %v121, %v142
    %v169 = vmul.f32 %v121, %v146
    %v170 = vmul.f32 %v121, %v150
    %v171 = vmul.f32 %v121, %v154
    %v172 = vadd.f32 %v102, %v156
    %v173 = vadd.f32 %v103, %v157
    %v174 = vadd.f32 %v104, %v158
    %v175 = vadd.f32 %v105, %v159
    %v176 = vadd.f32 %v106, %v160
    %v177 = vadd.f32 %v107, %v161
    %v178 = vadd.f32 %v108, %v162
    %v179 = vadd.f32 %v109, %v163
    %v180 = vadd.f32 %v110, %v164
    %v181 = vadd.f32 %v111, %v165
    %v182 = vadd.f32 %v112, %v166
    %v183 = vadd.f32 %v113, %v167
    %v184 = vadd.f32 %v114, %v168
    %v185 = vadd.f32 %v115, %v169
    %v186 = vadd.f32 %v116, %v170
    %v187 = vadd.f32 %v117, %v171
    %189 = vset.pattern.permute.xlu0 0
    %190 = vperm.xlu0 %189, %v39
    %v191 = vpop.permute.xlu0 %190
    %194 = vset.pattern.permute.xlu0 0
    %195 = vperm.xlu0 %194, %v40
    %v196 = vpop.permute.xlu0 %195
    %199 = vset.pattern.permute.xlu0 0
    %200 = vperm.xlu0 %199, %v41
    %v201 = vpop.permute.xlu0 %200
    %204 = vset.pattern.permute.xlu0 0
    %205 = vperm.xlu0 %204, %v42
    %v206 = vpop.permute.xlu0 %205
    %209 = vset.pattern.permute.xlu0 0
    %210 = vperm.xlu0 %209, %v43
    %v211 = vpop.permute.xlu0 %210
    %214 = vset.pattern.permute.xlu0 0
    %215 = vperm.xlu0 %214, %v44
    %v216 = vpop.permute.xlu0 %215
    %219 = vset.pattern.permute.xlu0 0
    %220 = vperm.xlu0 %219, %v45
    %v221 = vpop.permute.xlu0 %220
    %224 = vset.pattern.permute.xlu0 0
    %225 = vperm.xlu0 %224, %v46
    %v226 = vpop.permute.xlu0 %225
    %v228 = vadd.f32 %v172, %v191
    %v229 = vadd.f32 %v173, %v196
    %v230 = vadd.f32 %v174, %v201
    %v231 = vadd.f32 %v175, %v206
    %v232 = vadd.f32 %v176, %v211
    %v233 = vadd.f32 %v177, %v216
    %v234 = vadd.f32 %v178, %v221
    %v235 = vadd.f32 %v179, %v226
    %v236 = vadd.f32 %v180, %v191
    %v237 = vadd.f32 %v181, %v196
    %v238 = vadd.f32 %v182, %v201
    %v239 = vadd.f32 %v183, %v206
    %v240 = vadd.f32 %v184, %v211
    %v241 = vadd.f32 %v185, %v216
    %v242 = vadd.f32 %v186, %v221
    %v243 = vadd.f32 %v187, %v226
    %v244 = vmax.f32 %v228, 0.0
    %v245 = vmax.f32 %v229, 0.0
    %v246 = vmax.f32 %v230, 0.0
    %v247 = vmax.f32 %v231, 0.0
    %v248 = vmax.f32 %v232, 0.0
    %v249 = vmax.f32 %v233, 0.0
    %v250 = vmax.f32 %v234, 0.0
    %v251 = vmax.f32 %v235, 0.0
    %v252 = vmax.f32 %v236, 0.0
    %v253 = vmax.f32 %v237, 0.0
    %v254 = vmax.f32 %v238, 0.0
    %v255 = vmax.f32 %v239, 0.0
    %v256 = vmax.f32 %v240, 0.0
    %v257 = vmax.f32 %v241, 0.0
    %v258 = vmax.f32 %v242, 0.0
    %v259 = vmax.f32 %v243, 0.0
    %261 = vset.pattern.permute.xlu0 0
    %262 = vperm.xlu0 %261, %v47
    %v263 = vpop.permute.xlu0 %262
    %266 = vset.pattern.permute.xlu0 0
    %267 = vperm.xlu0 %266, %v48
    %v268 = vpop.permute.xlu0 %267
    %271 = vset.pattern.permute.xlu0 0
    %272 = vperm.xlu0 %271, %v49
    %v273 = vpop.permute.xlu0 %272
    %276 = vset.pattern.permute.xlu0 0
    %277 = vperm.xlu0 %276, %v50
    %v278 = vpop.permute.xlu0 %277
    %281 = vset.pattern.permute.xlu0 0
    %282 = vperm.xlu0 %281, %v51
    %v283 = vpop.permute.xlu0 %282
    %286 = vset.pattern.permute.xlu0 0
    %287 = vperm.xlu0 %286, %v52
    %v288 = vpop.permute.xlu0 %287
    %291 = vset.pattern.permute.xlu0 0
    %292 = vperm.xlu0 %291, %v53
    %v293 = vpop.permute.xlu0 %292
    %296 = vset.pattern.permute.xlu0 0
    %297 = vperm.xlu0 %296, %v54
    %v298 = vpop.permute.xlu0 %297
    %v300 = vmul.f32 %v244, %v263
    %v301 = vmul.f32 %v245, %v268
    %v302 = vmul.f32 %v246, %v273
    %v303 = vmul.f32 %v247, %v278
    %v304 = vmul.f32 %v248, %v283
    %v305 = vmul.f32 %v249, %v288
    %v306 = vmul.f32 %v250, %v293
    %v307 = vmul.f32 %v251, %v298
    %v308 = vmul.f32 %v252, %v263
    %v309 = vmul.f32 %v253, %v268
    %v310 = vmul.f32 %v254, %v273
    %v311 = vmul.f32 %v255, %v278
    %v312 = vmul.f32 %v256, %v283
    %v313 = vmul.f32 %v257, %v288
    %v314 = vmul.f32 %v258, %v293
    %v315 = vmul.f32 %v259, %v298
    %v316 = vadd.f32 %v300, %v301
    %v317 = vadd.f32 %v316, %v302
    %v318 = vadd.f32 %v317, %v303
    %v319 = vadd.f32 %v318, %v304
    %v320 = vadd.f32 %v319, %v305
    %v321 = vadd.f32 %v320, %v306
    %vm322 = vcmask 1043456
    %v323 = vsel %vm322, %v307, 0.0
    %v324 = vadd.f32 %v321, %v323
    %v325 = vrot.slane %v324, 4
    %v326 = vadd.f32 %v324, %v325
    %v327 = vrot.slane %v326, 2
    %v328 = vadd.f32 %v326, %v327
    %v329 = vrot.slane %v328, 1
    %v330 = vadd.f32 %v328, %v329
    %v331 = vadd.f32 %v308, %v309
    %v332 = vadd.f32 %v331, %v310
    %v333 = vadd.f32 %v332, %v311
    %v334 = vadd.f32 %v333, %v312
    %v335 = vadd.f32 %v334, %v313
    %v336 = vadd.f32 %v335, %v314
    %v337 = vsel %vm322, %v315, 0.0
    %v338 = vadd.f32 %v336, %v337
    %v339 = vrot.slane %v338, 4
    %v340 = vadd.f32 %v338, %v339
    %v341 = vrot.slane %v340, 2
    %v342 = vadd.f32 %v340, %v341
    %v343 = vrot.slane %v342, 1
    %v344 = vadd.f32 %v342, %v343
    %345 = vset.pattern.permute.xlu0 1
    %346 = vperm.xlu0 %345, %v47
    %v347 = vpop.permute.xlu0 %346
    %349 = vset.pattern.permute.xlu0 1
    %350 = vperm.xlu0 %349, %v48
    %v351 = vpop.permute.xlu0 %350
    %353 = vset.pattern.permute.xlu0 1
    %354 = vperm.xlu0 %353, %v49
    %v355 = vpop.permute.xlu0 %354
    %357 = vset.pattern.permute.xlu0 1
    %358 = vperm.xlu0 %357, %v50
    %v359 = vpop.permute.xlu0 %358
    %361 = vset.pattern.permute.xlu0 1
    %362 = vperm.xlu0 %361, %v51
    %v363 = vpop.permute.xlu0 %362
    %365 = vset.pattern.permute.xlu0 1
    %366 = vperm.xlu0 %365, %v52
    %v367 = vpop.permute.xlu0 %366
    %369 = vset.pattern.permute.xlu0 1
    %370 = vperm.xlu0 %369, %v53
    %v371 = vpop.permute.xlu0 %370
    %373 = vset.pattern.permute.xlu0 1
    %374 = vperm.xlu0 %373, %v54
    %v375 = vpop.permute.xlu0 %374
    %v377 = vmul.f32 %v244, %v347
    %v378 = vmul.f32 %v245, %v351
    %v379 = vmul.f32 %v246, %v355
    %v380 = vmul.f32 %v247, %v359
    %v381 = vmul.f32 %v248, %v363
    %v382 = vmul.f32 %v249, %v367
    %v383 = vmul.f32 %v250, %v371
    %v384 = vmul.f32 %v251, %v375
    %v385 = vmul.f32 %v252, %v347
    %v386 = vmul.f32 %v253, %v351
    %v387 = vmul.f32 %v254, %v355
    %v388 = vmul.f32 %v255, %v359
    %v389 = vmul.f32 %v256, %v363
    %v390 = vmul.f32 %v257, %v367
    %v391 = vmul.f32 %v258, %v371
    %v392 = vmul.f32 %v259, %v375
    %v393 = vadd.f32 %v377, %v378
    %v394 = vadd.f32 %v393, %v379
    %v395 = vadd.f32 %v394, %v380
    %v396 = vadd.f32 %v395, %v381
    %v397 = vadd.f32 %v396, %v382
    %v398 = vadd.f32 %v397, %v383
    %v399 = vsel %vm322, %v384, 0.0
    %v400 = vadd.f32 %v398, %v399
    %v401 = vrot.slane %v400, 4
    %v402 = vadd.f32 %v400, %v401
    %v403 = vrot.slane %v402, 2
    %v404 = vadd.f32 %v402, %v403
    %v405 = vrot.slane %v404, 1
    %v406 = vadd.f32 %v404, %v405
    %v407 = vadd.f32 %v385, %v386
    %v408 = vadd.f32 %v407, %v387
    %v409 = vadd.f32 %v408, %v388
    %v410 = vadd.f32 %v409, %v389
    %v411 = vadd.f32 %v410, %v390
    %v412 = vadd.f32 %v411, %v391
    %v413 = vsel %vm322, %v392, 0.0
    %v414 = vadd.f32 %v412, %v413
    %v415 = vrot.slane %v414, 4
    %v416 = vadd.f32 %v414, %v415
    %v417 = vrot.slane %v416, 2
    %v418 = vadd.f32 %v416, %v417
    %v419 = vrot.slane %v418, 1
    %v420 = vadd.f32 %v418, %v419
    %421 = vrot.lane.b32.xlu0 %v31, 127
    %v422 = vpop.permute.xlu0 %421
    %423 = vrot.lane.b32.xlu0 %v32, 127
    %v424 = vpop.permute.xlu0 %423
    %425 = vrot.lane.b32.xlu0 %v33, 127
    %v426 = vpop.permute.xlu0 %425
    %427 = vrot.lane.b32.xlu0 %v34, 127
    %v428 = vpop.permute.xlu0 %427
    %429 = vrot.lane.b32.xlu0 %v35, 127
    %v430 = vpop.permute.xlu0 %429
    %431 = vrot.lane.b32.xlu0 %v36, 127
    %v432 = vpop.permute.xlu0 %431
    %433 = vrot.lane.b32.xlu0 %v37, 127
    %v434 = vpop.permute.xlu0 %433
    %435 = vrot.lane.b32.xlu0 %v38, 127
    %v436 = vpop.permute.xlu0 %435
    %v445 = vmul.f32 %v120, %v422
    %v446 = vmul.f32 %v120, %v424
    %v447 = vmul.f32 %v120, %v426
    %v448 = vmul.f32 %v120, %v428
    %v449 = vmul.f32 %v120, %v430
    %v450 = vmul.f32 %v120, %v432
    %v451 = vmul.f32 %v120, %v434
    %v452 = vmul.f32 %v120, %v436
    %v453 = vmul.f32 %v121, %v422
    %v454 = vmul.f32 %v121, %v424
    %v455 = vmul.f32 %v121, %v426
    %v456 = vmul.f32 %v121, %v428
    %v457 = vmul.f32 %v121, %v430
    %v458 = vmul.f32 %v121, %v432
    %v459 = vmul.f32 %v121, %v434
    %v460 = vmul.f32 %v121, %v436
    %v462 = vrot.slane %v30, 1
    %v463 = vperm.slane %v30, 0
    %v464 = vperm.slane %v462, 0
    %467 = vrot.lane.b32.xlu0 %v31, 126
    %v468 = vpop.permute.xlu0 %467
    %469 = vrot.lane.b32.xlu0 %v32, 126
    %v470 = vpop.permute.xlu0 %469
    %471 = vrot.lane.b32.xlu0 %v33, 126
    %v472 = vpop.permute.xlu0 %471
    %473 = vrot.lane.b32.xlu0 %v34, 126
    %v474 = vpop.permute.xlu0 %473
    %475 = vrot.lane.b32.xlu0 %v35, 126
    %v476 = vpop.permute.xlu0 %475
    %477 = vrot.lane.b32.xlu0 %v36, 126
    %v478 = vpop.permute.xlu0 %477
    %479 = vrot.lane.b32.xlu0 %v37, 126
    %v480 = vpop.permute.xlu0 %479
    %481 = vrot.lane.b32.xlu0 %v38, 126
    %v482 = vpop.permute.xlu0 %481
    %v491 = vmul.f32 %v463, %v468
    %v492 = vmul.f32 %v463, %v470
    %v493 = vmul.f32 %v463, %v472
    %v494 = vmul.f32 %v463, %v474
    %v495 = vmul.f32 %v463, %v476
    %v496 = vmul.f32 %v463, %v478
    %v497 = vmul.f32 %v463, %v480
    %v498 = vmul.f32 %v463, %v482
    %v499 = vmul.f32 %v464, %v468
    %v500 = vmul.f32 %v464, %v470
    %v501 = vmul.f32 %v464, %v472
    %v502 = vmul.f32 %v464, %v474
    %v503 = vmul.f32 %v464, %v476
    %v504 = vmul.f32 %v464, %v478
    %v505 = vmul.f32 %v464, %v480
    %v506 = vmul.f32 %v464, %v482
    %v507 = vadd.f32 %v445, %v491
    %v508 = vadd.f32 %v446, %v492
    %v509 = vadd.f32 %v447, %v493
    %v510 = vadd.f32 %v448, %v494
    %v511 = vadd.f32 %v449, %v495
    %v512 = vadd.f32 %v450, %v496
    %v513 = vadd.f32 %v451, %v497
    %v514 = vadd.f32 %v452, %v498
    %v515 = vadd.f32 %v453, %v499
    %v516 = vadd.f32 %v454, %v500
    %v517 = vadd.f32 %v455, %v501
    %v518 = vadd.f32 %v456, %v502
    %v519 = vadd.f32 %v457, %v503
    %v520 = vadd.f32 %v458, %v504
    %v521 = vadd.f32 %v459, %v505
    %v522 = vadd.f32 %v460, %v506
    %523 = vrot.lane.b32.xlu0 %v39, 127
    %v524 = vpop.permute.xlu0 %523
    %525 = vrot.lane.b32.xlu0 %v40, 127
    %v526 = vpop.permute.xlu0 %525
    %527 = vrot.lane.b32.xlu0 %v41, 127
    %v528 = vpop.permute.xlu0 %527
    %529 = vrot.lane.b32.xlu0 %v42, 127
    %v530 = vpop.permute.xlu0 %529
    %531 = vrot.lane.b32.xlu0 %v43, 127
    %v532 = vpop.permute.xlu0 %531
    %533 = vrot.lane.b32.xlu0 %v44, 127
    %v534 = vpop.permute.xlu0 %533
    %535 = vrot.lane.b32.xlu0 %v45, 127
    %v536 = vpop.permute.xlu0 %535
    %537 = vrot.lane.b32.xlu0 %v46, 127
    %v538 = vpop.permute.xlu0 %537
    %v547 = vadd.f32 %v507, %v524
    %v548 = vadd.f32 %v508, %v526
    %v549 = vadd.f32 %v509, %v528
    %v550 = vadd.f32 %v510, %v530
    %v551 = vadd.f32 %v511, %v532
    %v552 = vadd.f32 %v512, %v534
    %v553 = vadd.f32 %v513, %v536
    %v554 = vadd.f32 %v514, %v538
    %v555 = vadd.f32 %v515, %v524
    %v556 = vadd.f32 %v516, %v526
    %v557 = vadd.f32 %v517, %v528
    %v558 = vadd.f32 %v518, %v530
    %v559 = vadd.f32 %v519, %v532
    %v560 = vadd.f32 %v520, %v534
    %v561 = vadd.f32 %v521, %v536
    %v562 = vadd.f32 %v522, %v538
    %v563 = vmax.f32 %v547, 0.0
    %v564 = vmax.f32 %v548, 0.0
    %v565 = vmax.f32 %v549, 0.0
    %v566 = vmax.f32 %v550, 0.0
    %v567 = vmax.f32 %v551, 0.0
    %v568 = vmax.f32 %v552, 0.0
    %v569 = vmax.f32 %v553, 0.0
    %v570 = vmax.f32 %v554, 0.0
    %v571 = vmax.f32 %v555, 0.0
    %v572 = vmax.f32 %v556, 0.0
    %v573 = vmax.f32 %v557, 0.0
    %v574 = vmax.f32 %v558, 0.0
    %v575 = vmax.f32 %v559, 0.0
    %v576 = vmax.f32 %v560, 0.0
    %v577 = vmax.f32 %v561, 0.0
    %v578 = vmax.f32 %v562, 0.0
    %579 = vrot.lane.b32.xlu0 %v47, 126
    %v580 = vpop.permute.xlu0 %579
    %581 = vrot.lane.b32.xlu0 %v48, 126
    %v582 = vpop.permute.xlu0 %581
    %583 = vrot.lane.b32.xlu0 %v49, 126
    %v584 = vpop.permute.xlu0 %583
    %585 = vrot.lane.b32.xlu0 %v50, 126
    %v586 = vpop.permute.xlu0 %585
    %587 = vrot.lane.b32.xlu0 %v51, 126
    %v588 = vpop.permute.xlu0 %587
    %589 = vrot.lane.b32.xlu0 %v52, 126
    %v590 = vpop.permute.xlu0 %589
    %591 = vrot.lane.b32.xlu0 %v53, 126
    %v592 = vpop.permute.xlu0 %591
    %593 = vrot.lane.b32.xlu0 %v54, 126
    %v594 = vpop.permute.xlu0 %593
    %v603 = vmul.f32 %v563, %v580
    %v604 = vmul.f32 %v564, %v582
    %v605 = vmul.f32 %v565, %v584
    %v606 = vmul.f32 %v566, %v586
    %v607 = vmul.f32 %v567, %v588
    %v608 = vmul.f32 %v568, %v590
    %v609 = vmul.f32 %v569, %v592
    %v610 = vmul.f32 %v570, %v594
    %v611 = vmul.f32 %v571, %v580
    %v612 = vmul.f32 %v572, %v582
    %v613 = vmul.f32 %v573, %v584
    %v614 = vmul.f32 %v574, %v586
    %v615 = vmul.f32 %v575, %v588
    %v616 = vmul.f32 %v576, %v590
    %v617 = vmul.f32 %v577, %v592
    %v618 = vmul.f32 %v578, %v594
    %vm619 = vcmask 1048568
    %v620 = vsel %vm619, %v603, 0.0
    %v621 = vsel %vm619, %v604, 0.0
    %v622 = vadd.f32 %v620, %v621
    %v623 = vsel %vm619, %v605, 0.0
    %v624 = vadd.f32 %v622, %v623
    %v625 = vsel %vm619, %v606, 0.0
    %v626 = vadd.f32 %v624, %v625
    %v627 = vsel %vm619, %v607, 0.0
    %v628 = vadd.f32 %v626, %v627
    %v629 = vsel %vm619, %v608, 0.0
    %v630 = vadd.f32 %v628, %v629
    %v631 = vsel %vm619, %v609, 0.0
    %v632 = vadd.f32 %v630, %v631
    %vm633 = vcmask 1044472
    %v634 = vsel %vm633, %v610, 0.0
    %v635 = vadd.f32 %v632, %v634
    %v636 = vrot.slane %v635, 4
    %v637 = vadd.f32 %v635, %v636
    %v638 = vrot.slane %v637, 2
    %v639 = vadd.f32 %v637, %v638
    %v640 = vrot.slane %v639, 1
    %v641 = vadd.f32 %v639, %v640
    %v642 = vsel %vm619, %v611, 0.0
    %v643 = vsel %vm619, %v612, 0.0
    %v644 = vadd.f32 %v642, %v643
    %v645 = vsel %vm619, %v613, 0.0
    %v646 = vadd.f32 %v644, %v645
    %v647 = vsel %vm619, %v614, 0.0
    %v648 = vadd.f32 %v646, %v647
    %v649 = vsel %vm619, %v615, 0.0
    %v650 = vadd.f32 %v648, %v649
    %v651 = vsel %vm619, %v616, 0.0
    %v652 = vadd.f32 %v650, %v651
    %v653 = vsel %vm619, %v617, 0.0
    %v654 = vadd.f32 %v652, %v653
    %v655 = vsel %vm633, %v618, 0.0
    %v656 = vadd.f32 %v654, %v655
    %v657 = vrot.slane %v656, 4
    %v658 = vadd.f32 %v656, %v657
    %v659 = vrot.slane %v658, 2
    %v660 = vadd.f32 %v658, %v659
    %v661 = vrot.slane %v660, 1
    %v662 = vadd.f32 %v660, %v661
    %vm665 = vcmask 1041409
    %v666 = vsel %vm665, %v420, %v406
    %667 = vrot.lane.b32.xlu0 %v666, 127
    %v668 = vpop.permute.xlu0 %667
    %v672 = vsel %vm665, %v662, %v641
    %vm674 = vcmask 1039360
    %v675 = vsel %vm674, %v668, %v672
    %v677 = vrot.slane %v675, 1
    %v680 = vadd.f32 %v330, %v675
    %v681 = vadd.f32 %v344, %v677
    %v682 = vstv %s55
    %v683 = vadd.f32 %v680, %v682
    %v684 = vadd.f32 %v681, %v682
    %v685 = vmax.f32 %v683, 0.0
    %v686 = vmax.f32 %v684, 0.0
    %v689 = vrot.slane %v686, 7
    %v690 = vsel %vm665, %v689, %v685
    %692 = vst [vmem:[#allocation3] sm:$0x3] %v690
    // Predicated region
    $region30: #{tpu_custom_call.1} parent=1 // pred_check
      _
    $region31: #{tpu_custom_call.1} parent=1 // pred_check_branch
      %694 = sbr.rel (0) target = $region33
    $region32: #{tpu_custom_call.1} parent=1 // pred_region
      %696 = vsyncadd [#allocation4], 0
      %s698 = sshll.u32 [#allocation3], 4
      %s699 = int_to_ptr.vmem [resolvable:$true] %s698
      %s700 = sshll.u32 %s7, 4
      %s701 = int_to_ptr.hbm [resolvable:$true] %s700
      %703 = dma.vmem_to_hbm [thread:$0]  %s699, 32, %s701, [#allocation4]
    $region33: #{tpu_custom_call.1} parent=1 // pred_fallthru
      _
    // Predicated region
    $region34: #{tpu_custom_call.1} parent=1 // pred_check
      _
    $region35: #{tpu_custom_call.1} parent=1 // pred_check_branch
      %705 = sbr.rel (0) target = $region37
    $region36: #{tpu_custom_call.1} parent=1 // pred_region
      %707 = dma.done [#allocation4], 32
    $region37: #{tpu_custom_call.1} parent=1 // pred_fallthru
      _
    %708 = vsyncpa [#allocation4], 1

</llo_original>
